<compile_context>
chip_gen: v5e
topology: v5e:2x2
jax: 0.10.0
libtpu: 0.0.40
codegen_flags: <defaults>
</compile_context>

<pallas_src>
import math

import jax
import jax.numpy as jnp
from jax import lax
from jax.experimental import pallas as pl
from jax.experimental.pallas import tpu as pltpu


_INV_SQRT2 = 1.0 / math.sqrt(2.0)
_SQRT_2_OVER_PI = math.sqrt(2.0 / math.pi)


def _gelu_exact(x):
    # Matches torch.nn.functional.gelu default (erf-based).
    return 0.5 * x * (1.0 + lax.erf(x * _INV_SQRT2))


def _gelu_tanh(x):
    # tanh approximation (EUP-friendly); only used when approx_gelu=True.
    return 0.5 * x * (1.0 + jnp.tanh(_SQRT_2_OVER_PI * (x + 0.044715 * x * x * x)))


def _round_up(x, m):
    return ((x + m - 1) // m) * m


def _cdiv(a, b):
    return (a + b - 1) // b


def _tpu_vmem_and_cores():
    """Best-effort per-chip VMEM capacity and TensorCore count."""
    kind = ""
    try:
        kind = jax.devices()[0].device_kind.lower()
    except Exception:  # pragma: no cover - defensive
        pass
    is_v7 = "v7" in kind
    vmem = None
    try:
        info = pltpu.get_tpu_info()
        vmem = getattr(info, "vmem_capacity_bytes", None)
    except Exception:  # pragma: no cover - defensive
        vmem = None
    if not vmem or vmem <= 0:
        vmem = (64 << 20) if is_v7 else (128 << 20)
    num_cores = 2 if is_v7 else 1
    return int(vmem), num_cores


def _make_mlp_kernel(accumulate_in_output, approx_gelu):
    """Build the kernel body.

    Per (row-tile i, linear_dim-chunk k) grid step:
      x_ref:   (tm, Hp)  compute dtype
      w1_ref:  (Hp, tn)  compute dtype
      b1_ref:  (1,  tn)  f32
      w2_ref:  (tn, Hp)  compute dtype
      b2_ref:  (1,  Hp)  f32
      o_ref:   (tm, Hp)  output dtype (resident across k)
      acc_ref: (tm, Hp)  f32 scratch (only when not accumulate_in_output)
    """
    gelu = _gelu_tanh if approx_gelu else _gelu_exact

    if accumulate_in_output:
        # out dtype is f32 -> use the resident output block as the accumulator.
        def kernel(x_ref, w1_ref, b1_ref, w2_ref, b2_ref, o_ref):
            k = pl.program_id(1)
            h = jnp.dot(x_ref[...], w1_ref[...], preferred_element_type=jnp.float32)
            h = gelu(h + b1_ref[...])
            # dropout (eval mode) -> identity
            part = jnp.dot(
                h.astype(w2_ref.dtype), w2_ref[...], preferred_element_type=jnp.float32
            )

            @pl.when(k == 0)
            def _():
                o_ref[...] = part

            @pl.when(k != 0)
            def _():
                o_ref[...] += part

            @pl.when(k == pl.num_programs(1) - 1)
            def _():
                # dropout (eval mode) -> identity
                o_ref[...] += b2_ref[...]

        return kernel

    def kernel(x_ref, w1_ref, b1_ref, w2_ref, b2_ref, o_ref, acc_ref):
        k = pl.program_id(1)
        h = jnp.dot(x_ref[...], w1_ref[...], preferred_element_type=jnp.float32)
        h = gelu(h + b1_ref[...])
        # dropout (eval mode) -> identity
        part = jnp.dot(
            h.astype(w2_ref.dtype), w2_ref[...], preferred_element_type=jnp.float32
        )

        @pl.when(k == 0)
        def _():
            acc_ref[...] = part

        @pl.when(k != 0)
        def _():
            acc_ref[...] += part

        @pl.when(k == pl.num_programs(1) - 1)
        def _():
            # dropout (eval mode) -> identity
            o_ref[...] = (acc_ref[...] + b2_ref[...]).astype(o_ref.dtype)

    return kernel


def mlp_forward(
    x, w1, b1, w2, b2, *, tm=None, tn=None, compute_dtype=jnp.bfloat16, approx_gelu=False
):
    """x: [M, hidden].  w1: [hidden, linear_dim], w2: [linear_dim, hidden].
    Returns [M, hidden] in x.dtype (eval-mode dropout == identity)."""
    M, hidden = x.shape
    assert w1.shape[0] == hidden
    linear_dim = w1.shape[1]
    assert w2.shape == (linear_dim, hidden)
    out_dtype = x.dtype

    cbytes = jnp.dtype(compute_dtype).itemsize
    obytes = jnp.dtype(out_dtype).itemsize
    # Only accumulate directly in the output block when it is f32 (partial
    # sums in a narrower output buffer would lose precision).
    acc_in_out = jnp.dtype(out_dtype) == jnp.dtype(jnp.float32)

    vmem_capacity, num_cores = _tpu_vmem_and_cores()
    big_vmem = vmem_capacity >= (100 << 20)          # v5e / v6e (128 MiB); v7x is 64 MiB
    # Working-set budget: leave headroom for Mosaic internal scratch/semaphores.
    vmem_budget = max(int(0.85 * vmem_capacity) - (6 << 20), 16 << 20)

    Hp = _round_up(hidden, 128)                      # lane-dense feature dim
    ROW_ALIGN = 16                                   # bf16 packs 2 rows / sublane

    # ---- row tile -----------------------------------------------------------
    tm_v = tm if tm is not None else (512 if big_vmem else 256)
    if num_cores > 1:
        # Keep >= 2*num_cores row tiles (when M allows) so the "parallel" axis
        # actually shards across both v7x TensorCores.
        tm_cap = _round_up(max(_cdiv(M, 2 * num_cores), ROW_ALIGN), ROW_ALIGN)
        tm_v = min(tm_v, tm_cap)
    tm_v = max(ROW_ALIGN, min(_round_up(tm_v, ROW_ALIGN), _round_up(M, ROW_ALIGN)))

    # ---- linear_dim chunk ---------------------------------------------------
    tn_v = tn if tn is not None else (1024 if big_vmem else 512)
    tn_v = max(128, min(_round_up(tn_v, 128), _round_up(linear_dim, 128)))

    def vmem_est(tm_, tn_):
        est = (
            2 * tm_ * Hp * cbytes          # x row tile (double-buffered)
            + 2 * Hp * tn_ * cbytes        # W1 chunk
            + 2 * tn_ * Hp * cbytes        # W2 chunk
            + 2 * 8 * (tn_ + Hp) * 4       # biases (sublane-padded)
            + 2 * tm_ * Hp * obytes        # output tile
        )
        if not acc_in_out:
            est += tm_ * Hp * 4            # separate f32 accumulator
        return est

    # Shrink tn first (fewer, larger k steps preferred), then tm, until fit.
    while tn_v > 128 and vmem_est(tm_v, tn_v) > vmem_budget:
        tn_v = max(128, (tn_v // 2) // 128 * 128)
    while tm_v > ROW_ALIGN and vmem_est(tm_v, tn_v) > vmem_budget:
        tm_v = max(ROW_ALIGN, (tm_v // 2) // ROW_ALIGN * ROW_ALIGN)

    Mp = _round_up(M, tm_v)
    Lp = _round_up(linear_dim, tn_v)
    grid = (Mp // tm_v, Lp // tn_v)
    n_row_tiles = grid[0]

    # ---- padded operands ----------------------------------------------------
    def pad2(a, r, c):
        return jnp.pad(a, ((0, r - a.shape[0]), (0, c - a.shape[1])))

    xp = pad2(x, Mp, Hp).astype(compute_dtype)
    w1p = pad2(w1, Hp, Lp).astype(compute_dtype)
    w2p = pad2(w2, Lp, Hp).astype(compute_dtype)
    b1p = pad2(b1.reshape(1, -1), 1, Lp).astype(jnp.float32)
    b2p = pad2(b2.reshape(1, -1), 1, Hp).astype(jnp.float32)

    # ---- compiler params / cost ---------------------------------------------
    est = vmem_est(tm_v, tn_v)
    vmem_limit = int(min(max(est + (16 << 20), 32 << 20), int(0.875 * vmem_capacity)))
    vmem_limit = max(vmem_limit, est + (2 << 20))
    vmem_limit = int(min(vmem_limit, vmem_capacity))

    cost = pl.CostEstimate(
        flops=4 * Mp * Hp * Lp,                        # two matmuls, 2 flops/MAC
        transcendentals=Mp * Lp,                       # erf/tanh in the GELU
        bytes_accessed=int(
            Mp * Hp * cbytes                           # activations (read once)
            + n_row_tiles * 2 * Hp * Lp * cbytes       # W1 + W2 re-streamed per row tile
            + n_row_tiles * (Lp + Hp) * 4              # biases
            + Mp * Hp * obytes                         # output
        ),
    )

    kernel = _make_mlp_kernel(acc_in_out, approx_gelu)
    scratch_shapes = [] if acc_in_out else [pltpu.VMEM((tm_v, Hp), jnp.float32)]

    # TODO(synk): if a v5e profile shows exposed weight DMA after raising tm,
    # bump the W1/W2 specs to pipeline_mode=pl.Buffered(3).
    out = pl.pallas_call(
        kernel,
        out_shape=jax.ShapeDtypeStruct((Mp, Hp), out_dtype),
        grid_spec=pltpu.PrefetchScalarGridSpec(
            num_scalar_prefetch=0,
            grid=grid,
            in_specs=[
                pl.BlockSpec((tm_v, Hp), lambda i, k: (i, 0)),   # x row tile
                pl.BlockSpec((Hp, tn_v), lambda i, k: (0, k)),   # W1 chunk
                pl.BlockSpec((1, tn_v), lambda i, k: (0, k)),    # b1 chunk
                pl.BlockSpec((tn_v, Hp), lambda i, k: (k, 0)),   # W2 chunk
                pl.BlockSpec((1, Hp), lambda i, k: (0, 0)),      # b2
            ],
            out_specs=pl.BlockSpec((tm_v, Hp), lambda i, k: (i, 0)),
            scratch_shapes=scratch_shapes,
        ),
        compiler_params=pltpu.CompilerParams(
            dimension_semantics=("parallel", "arbitrary"),
            vmem_limit_bytes=vmem_limit,
        ),
        cost_estimate=cost,
    )(xp, w1p, b1p, w2p, b2p)

    return out[:M, :hidden]


def init_params(key, hidden_size, linear_dim, std_norm):
    """Deterministic init matching the PyTorch module's _init_weights:
    xavier_uniform for weights, normal(std=std_norm) for biases.
    Weights returned already transposed to [in, out] for x @ W."""
    k1, k2, k3, k4 = jax.random.split(key, 4)

    def xavier_uniform(k, fan_in, fan_out):
        limit = math.sqrt(6.0 / (fan_in + fan_out))
        return jax.random.uniform(
            k, (fan_in, fan_out), jnp.float32, minval=-limit, maxval=limit
        )

    w1 = xavier_uniform(k1, hidden_size, linear_dim)   # [hidden, linear_dim]
    w2 = xavier_uniform(k2, linear_dim, hidden_size)   # [linear_dim, hidden]
    b1 = std_norm * jax.random.normal(k3, (1, linear_dim), jnp.float32)
    b2 = std_norm * jax.random.normal(k4, (1, hidden_size), jnp.float32)
    return w1, b1, w2, b2


def reference_mlp(x, w1, b1, w2, b2):
    h = _gelu_exact(x @ w1 + b1)
    return h @ w2 + b2


if __name__ == "__main__":
    # Small, forward-implied shapes.
    batch, seq, hidden_size, linear_dim = 2, 8, 32, 128
    dropout_rate = 0.1   # eval mode -> no-op
    std_norm = 0.02

    key = jax.random.PRNGKey(0)
    kx, kp = jax.random.split(key)

    x = jax.random.normal(kx, (batch, seq, hidden_size), jnp.float32)
    w1, b1, w2, b2 = init_params(kp, hidden_size, linear_dim, std_norm)

    # Flatten tokens: [batch*seq, hidden]
    x2d = x.reshape(batch * seq, hidden_size)
    ref = reference_mlp(x2d, w1, b1, w2, b2)

    # Exact-semantics check: f32 matmul path matches the reference tightly.
    out_f32 = mlp_forward(x2d, w1, b1, w2, b2, compute_dtype=jnp.float32)
    jax.block_until_ready(out_f32)
    assert jnp.allclose(out_f32, ref, atol=1e-5, rtol=1e-5), "f32 mismatch vs reference"

    # Default performance path: bf16 MXU inputs, f32 accumulation.
    out = mlp_forward(x2d, w1, b1, w2, b2)
    jax.block_until_ready(out)
    assert jnp.allclose(out, ref, atol=3e-2, rtol=3e-2), "bf16 mismatch vs reference"

    out3d = out.reshape(batch, seq, hidden_size)
    jax.block_until_ready(out3d)

    print("KERNEL_OK")
</pallas_src>

<mosaic_0001>
module attributes {stable_mosaic.version = 11 : i64} {
  func.func @kernel(%arg0: i32, %arg1: i32, %arg2: memref<16x128xf32, #tpu.memory_space<vmem>>, %arg3: memref<128x128xf32, #tpu.memory_space<vmem>>, %arg4: memref<1x128xf32, #tpu.memory_space<vmem>>, %arg5: memref<128x128xf32, #tpu.memory_space<vmem>>, %arg6: memref<1x128xf32, #tpu.memory_space<vmem>>, %arg7: memref<16x128xf32, #tpu.memory_space<vmem>>) attributes {dimension_semantics = [#tpu.dimension_semantics<parallel>, #tpu.dimension_semantics<arbitrary>], iteration_bounds = array<i64: 1, 1>, scalar_prefetch = 0 : i64, scratch_operands = 0 : i64, tpu.core_type = #tpu.core_type<tc>, window_params = [{transform_indices = @transform_0, window_bounds = array<i64: 16, 128>}, {transform_indices = @transform_1, window_bounds = array<i64: 128, 128>}, {transform_indices = @transform_2, window_bounds = array<i64: 1, 128>}, {transform_indices = @transform_3, window_bounds = array<i64: 128, 128>}, {pipeline_mode = #tpu.pipeline_mode<synchronous>, transform_indices = @transform_4, window_bounds = array<i64: 1, 128>}, {transform_indices = @transform_5, window_bounds = array<i64: 16, 128>}]} {
    %c0 = arith.constant 0 : index
    %c0_0 = arith.constant 0 : index
    %0 = vector.load %arg2[%c0, %c0_0] : memref<16x128xf32, #tpu.memory_space<vmem>>, vector<16x128xf32>
    %c0_1 = arith.constant 0 : index
    %c0_2 = arith.constant 0 : index
    %1 = vector.load %arg3[%c0_1, %c0_2] : memref<128x128xf32, #tpu.memory_space<vmem>>, vector<128x128xf32>
    %cst = arith.constant dense<0.000000e+00> : vector<16x128xf32>
    %2 = tpu.matmul %0, %1, %cst {dimension_numbers = #tpu.dot_dimension_numbers<[1], [0], [0], [1], [0, 0, 1, 1], [], []>} : vector<16x128xf32>, vector<128x128xf32>, vector<16x128xf32> -> vector<16x128xf32>
    %c0_3 = arith.constant 0 : index
    %c0_4 = arith.constant 0 : index
    %3 = vector.load %arg4[%c0_3, %c0_4] : memref<1x128xf32, #tpu.memory_space<vmem>>, vector<1x128xf32>
    %4 = vector.broadcast %3 : vector<1x128xf32> to vector<16x128xf32>
    %5 = arith.addf %2, %4 : vector<16x128xf32>
    %cst_5 = arith.constant 5.000000e-01 : f32
    %6 = vector.broadcast %cst_5 : f32 to vector<16x128xf32>
    %7 = arith.mulf %6, %5 : vector<16x128xf32>
    %cst_6 = arith.constant 0.707106769 : f32
    %8 = vector.broadcast %cst_6 : f32 to vector<16x128xf32>
    %9 = arith.mulf %5, %8 : vector<16x128xf32>
    %10 = math.erf %9 : vector<16x128xf32>
    %cst_7 = arith.constant 1.000000e+00 : f32
    %11 = vector.broadcast %cst_7 : f32 to vector<16x128xf32>
    %12 = arith.addf %11, %10 : vector<16x128xf32>
    %13 = arith.mulf %7, %12 : vector<16x128xf32>
    %c0_8 = arith.constant 0 : index
    %c0_9 = arith.constant 0 : index
    %14 = vector.load %arg5[%c0_8, %c0_9] : memref<128x128xf32, #tpu.memory_space<vmem>>, vector<128x128xf32>
    %cst_10 = arith.constant dense<0.000000e+00> : vector<16x128xf32>
    %15 = tpu.matmul %13, %14, %cst_10 {dimension_numbers = #tpu.dot_dimension_numbers<[1], [0], [0], [1], [0, 0, 1, 1], [], []>} : vector<16x128xf32>, vector<128x128xf32>, vector<16x128xf32> -> vector<16x128xf32>
    %c0_i32 = arith.constant 0 : i32
    %16 = arith.cmpi eq, %arg1, %c0_i32 : i32
    %17 = arith.extui %16 : i1 to i32
    %c0_i32_11 = arith.constant 0 : i32
    %18 = arith.cmpi ne, %17, %c0_i32_11 : i32
    scf.if %18 {
      %c0_16 = arith.constant 0 : index
      %c0_17 = arith.constant 0 : index
      %25 = vector.load %arg7[%c0_16, %c0_17] : memref<16x128xf32, #tpu.memory_space<vmem>>, vector<16x128xf32>
      tpu.vector_store %arg7[%c0_16, %c0_17], %15 {strides = array<i32>} : memref<16x128xf32, #tpu.memory_space<vmem>>, vector<16x128xf32>,
    } else {
    }
    %c0_i32_12 = arith.constant 0 : i32
    %19 = arith.cmpi ne, %arg1, %c0_i32_12 : i32
    %20 = arith.extui %19 : i1 to i32
    %c0_i32_13 = arith.constant 0 : i32
    %21 = arith.cmpi ne, %20, %c0_i32_13 : i32
    scf.if %21 {
      %c0_16 = arith.constant 0 : index
      %c0_17 = arith.constant 0 : index
      %25 = vector.load %arg7[%c0_16, %c0_17] : memref<16x128xf32, #tpu.memory_space<vmem>>, vector<16x128xf32>
      %26 = arith.addf %25, %15 : vector<16x128xf32>
      %c0_18 = arith.constant 0 : index
      %c0_19 = arith.constant 0 : index
      %27 = vector.load %arg7[%c0_18, %c0_19] : memref<16x128xf32, #tpu.memory_space<vmem>>, vector<16x128xf32>
      tpu.vector_store %arg7[%c0_18, %c0_19], %26 {strides = array<i32>} : memref<16x128xf32, #tpu.memory_space<vmem>>, vector<16x128xf32>,
    } else {
    }
    %c0_i32_14 = arith.constant 0 : i32
    %22 = arith.cmpi eq, %arg1, %c0_i32_14 : i32
    %23 = arith.extui %22 : i1 to i32
    %c0_i32_15 = arith.constant 0 : i32
    %24 = arith.cmpi ne, %23, %c0_i32_15 : i32
    scf.if %24 {
      %c0_16 = arith.constant 0 : index
      %c0_17 = arith.constant 0 : index
      %25 = vector.load %arg7[%c0_16, %c0_17] : memref<16x128xf32, #tpu.memory_space<vmem>>, vector<16x128xf32>
      %c0_18 = arith.constant 0 : index
      %c0_19 = arith.constant 0 : index
      %26 = vector.load %arg6[%c0_18, %c0_19] : memref<1x128xf32, #tpu.memory_space<vmem>>, vector<1x128xf32>
      %27 = vector.broadcast %26 : vector<1x128xf32> to vector<16x128xf32>
      %28 = arith.addf %25, %27 : vector<16x128xf32>
      %c0_20 = arith.constant 0 : index
      %c0_21 = arith.constant 0 : index
      %29 = vector.load %arg7[%c0_20, %c0_21] : memref<16x128xf32, #tpu.memory_space<vmem>>, vector<16x128xf32>
      tpu.vector_store %arg7[%c0_20, %c0_21], %28 {strides = array<i32>} : memref<16x128xf32, #tpu.memory_space<vmem>>, vector<16x128xf32>,
    } else {
    }
    return
  }
  func.func @transform_0(%arg0: i32, %arg1: i32) -> (i32, i32) {
    %c0_i32 = arith.constant 0 : i32
    %c0_i32_0 = arith.constant 0 : i32
    return %arg0, %c0_i32 : i32, i32
  }
  func.func @transform_1(%arg0: i32, %arg1: i32) -> (i32, i32) {
    %c0_i32 = arith.constant 0 : i32
    %c0_i32_0 = arith.constant 0 : i32
    return %c0_i32, %arg1 : i32, i32
  }
  func.func @transform_2(%arg0: i32, %arg1: i32) -> (i32, i32) {
    %c0_i32 = arith.constant 0 : i32
    %c0_i32_0 = arith.constant 0 : i32
    return %c0_i32, %arg1 : i32, i32
  }
  func.func @transform_3(%arg0: i32, %arg1: i32) -> (i32, i32) {
    %c0_i32 = arith.constant 0 : i32
    %c0_i32_0 = arith.constant 0 : i32
    return %arg1, %c0_i32 : i32, i32
  }
  func.func @transform_4(%arg0: i32, %arg1: i32) -> (i32, i32) {
    %c0_i32 = arith.constant 0 : i32
    %c0_i32_0 = arith.constant 0 : i32
    %c0_i32_1 = arith.constant 0 : i32
    return %c0_i32, %c0_i32_0 : i32, i32
  }
  func.func @transform_5(%arg0: i32, %arg1: i32) -> (i32, i32) {
    %c0_i32 = arith.constant 0 : i32
    %c0_i32_0 = arith.constant 0 : i32
    return %arg0, %c0_i32 : i32, i32
  }
}

</mosaic_0001>

<llo_original>
// kernel: tpu_custom_call.1
$region0: #{tpu_custom_call.1}
  #allocation0 [shape = 'u32[]', space=smem, size = 0x4, offset = 0x4, fixed_abs, tag = 'smem constant byte address 0x4 - core index']
  #allocation1 [shape = 'u32[72,128]{1,0:T(1,128)}', space=vmem, size = 0x9000, scoped, tag = 'internal scratch']
  %s0 = inlined_call_operand.hbm [shape: f32[16,128], index: 0, kind: input, shape index: {}]
  %s1 = inlined_call_operand.hbm [shape: f32[128,128], index: 1, kind: input, shape index: {}]
  %s2 = inlined_call_operand.vmem [shape: f32[1,128], index: 2, kind: input, shape index: {}]
  %s3 = inlined_call_operand.hbm [shape: f32[128,128], index: 3, kind: input, shape index: {}]
  %s4 = inlined_call_operand.vmem [shape: f32[1,128], index: 4, kind: input, shape index: {}]
  %s5 = inlined_call_operand.hbm [shape: f32[16,128], index: 5, kind: output, shape index: {}]
  %s6 = sld [smem:[#allocation0]]
  $region54: #{tpu_custom_call.1} parent=0
    _
  %s8 = ssub.s32 1, %s6
  %s9 = scalar_select 0, %s8, %s6
  $region1: #{tpu_custom_call.1} parent=0
    #allocation2 [shape = 'u8[8192]{0}', space=vmem, size = 0x2000, scoped, tag = 'input window, operand 0, single buffered']
    #allocation3 [shape = 's32[1]{0}', space=sflag, size = 0x4, scoped, tag = 'scoped memory for tpu_custom_call.1']
    #allocation4 [shape = 's32[1]{0}', space=sflag, size = 0x4, scoped, tag = 'scoped memory for tpu_custom_call.1']
    #allocation5 [shape = 'u8[65536]{0}', space=vmem, size = 0x10000, scoped, tag = 'input window, operand 1, single buffered']
    #allocation6 [shape = 's32[1]{0}', space=sflag, size = 0x4, scoped, tag = 'scoped memory for tpu_custom_call.1']
    #allocation7 [shape = 'u8[65536]{0}', space=vmem, size = 0x10000, scoped, tag = 'input window, operand 3, single buffered']
    #allocation8 [shape = 'u8[8192]{0}', space=vmem, size = 0x2000, scoped, tag = 'output window, operand 0, single buffered']
    %10 = vsyncpa [#allocation3], 0
    %11 = vsyncpa [#allocation6], 0
    %12 = vsyncpa [#allocation4], 0
    // Predicated region
    $region2: #{tpu_custom_call.1} parent=1 // pred_check
      _
    $region3: #{tpu_custom_call.1} parent=1 // pred_check_branch
      %14 = sbr.rel (0) target = $region5
    $region4: #{tpu_custom_call.1} parent=1 // pred_region
      %16 = vsyncadd [#allocation3], 0
      %s17 = sshll.u32 %s0, 4
      %s18 = int_to_ptr.hbm [resolvable:$true] %s17
      %s19 = sshll.u32 [#allocation2], 4
      %s20 = int_to_ptr.vmem [resolvable:$true] %s19
      %25 = dma.hbm_to_vmem [thread:$0]  %s18, 256, %s20, [#allocation3], 128, 128, 8
    $region5: #{tpu_custom_call.1} parent=1 // pred_fallthru
      _
    // Predicated region
    $region6: #{tpu_custom_call.1} parent=1 // pred_check
      _
    $region7: #{tpu_custom_call.1} parent=1 // pred_check_branch
      %27 = sbr.rel (0) target = $region9
    $region8: #{tpu_custom_call.1} parent=1 // pred_region
      %29 = vsyncadd [#allocation6], 0
      %s30 = sshll.u32 %s1, 4
      %s31 = int_to_ptr.hbm [resolvable:$true] %s30
      %s32 = sshll.u32 [#allocation5], 4
      %s33 = int_to_ptr.vmem [resolvable:$true] %s32
      %38 = dma.hbm_to_vmem [thread:$0]  %s31, 2048, %s33, [#allocation6], 128, 128, 8
    $region9: #{tpu_custom_call.1} parent=1 // pred_fallthru
      _
    // Predicated region
    $region10: #{tpu_custom_call.1} parent=1 // pred_check
      _
    $region11: #{tpu_custom_call.1} parent=1 // pred_check_branch
      %40 = sbr.rel (0) target = $region13
    $region12: #{tpu_custom_call.1} parent=1 // pred_region
      _
    $region13: #{tpu_custom_call.1} parent=1 // pred_fallthru
      _
    // Predicated region
    $region14: #{tpu_custom_call.1} parent=1 // pred_check
      _
    $region15: #{tpu_custom_call.1} parent=1 // pred_check_branch
      %42 = sbr.rel (0) target = $region17
    $region16: #{tpu_custom_call.1} parent=1 // pred_region
      %44 = vsyncadd [#allocation6], 0
      %s45 = sshll.u32 %s3, 4
      %s46 = int_to_ptr.hbm [resolvable:$true] %s45
      %s47 = sshll.u32 [#allocation7], 4
      %s48 = int_to_ptr.vmem [resolvable:$true] %s47
      %53 = dma.hbm_to_vmem [thread:$0]  %s46, 2048, %s48, [#allocation6], 128, 128, 8
    $region17: #{tpu_custom_call.1} parent=1 // pred_fallthru
      _
    // Predicated region
    $region18: #{tpu_custom_call.1} parent=1 // pred_check
      _
    $region19: #{tpu_custom_call.1} parent=1 // pred_check_branch
      %55 = sbr.rel (0) target = $region21
    $region20: #{tpu_custom_call.1} parent=1 // pred_region
      _
    $region21: #{tpu_custom_call.1} parent=1 // pred_fallthru
      _
    // Predicated region
    $region22: #{tpu_custom_call.1} parent=1 // pred_check
      _
    $region23: #{tpu_custom_call.1} parent=1 // pred_check_branch
      %57 = sbr.rel (0) target = $region25
    $region24: #{tpu_custom_call.1} parent=1 // pred_region
      %59 = dma.done [#allocation3], 256
    $region25: #{tpu_custom_call.1} parent=1 // pred_fallthru
      _
    // Predicated region
    $region26: #{tpu_custom_call.1} parent=1 // pred_check
      _
    $region27: #{tpu_custom_call.1} parent=1 // pred_check_branch
      %61 = sbr.rel (0) target = $region29
    $region28: #{tpu_custom_call.1} parent=1 // pred_region
      %63 = dma.done [#allocation6], 2048
    $region29: #{tpu_custom_call.1} parent=1 // pred_fallthru
      _
    // Predicated region
    $region30: #{tpu_custom_call.1} parent=1 // pred_check
      _
    $region31: #{tpu_custom_call.1} parent=1 // pred_check_branch
      %65 = sbr.rel (0) target = $region33
    $region32: #{tpu_custom_call.1} parent=1 // pred_region
      %67 = dma.done [#allocation6], 2048
    $region33: #{tpu_custom_call.1} parent=1 // pred_fallthru
      _
    %v68 = vld [vmem:[#allocation2] sm:$0xff]
    %v69 = vld [vmem:[#allocation2 + $0x8] sm:$0xff]
    %v70 = vld [vmem:[#allocation5] sm:$0xff]
    %v71 = vld [vmem:[#allocation5 + $0x8] sm:$0xff]
    %v72 = vld [vmem:[#allocation5 + $0x10] sm:$0xff]
    %v73 = vld [vmem:[#allocation5 + $0x18] sm:$0xff]
    %v74 = vld [vmem:[#allocation5 + $0x20] sm:$0xff]
    %v75 = vld [vmem:[#allocation5 + $0x28] sm:$0xff]
    %v76 = vld [vmem:[#allocation5 + $0x30] sm:$0xff]
    %v77 = vld [vmem:[#allocation5 + $0x38] sm:$0xff]
    %v78 = vld [vmem:[#allocation5 + $0x40] sm:$0xff]
    %v79 = vld [vmem:[#allocation5 + $0x48] sm:$0xff]
    %v80 = vld [vmem:[#allocation5 + $0x50] sm:$0xff]
    %v81 = vld [vmem:[#allocation5 + $0x58] sm:$0xff]
    %v82 = vld [vmem:[#allocation5 + $0x60] sm:$0xff]
    %v83 = vld [vmem:[#allocation5 + $0x68] sm:$0xff]
    %v84 = vld [vmem:[#allocation5 + $0x70] sm:$0xff]
    %v85 = vld [vmem:[#allocation5 + $0x78] sm:$0xff]
    %v86 = vld [vmem:[%s2] sm:$0x1]
    %v88 = vperm.slane %v86, 0
    %90 = vmatpush.msra.mxu0 %v85
    %91 = vmatpush.msra.mxu0 %v84
    %92 = vmatpush.msra.mxu0 %v83
    %93 = vmatpush.msra.mxu0 %v82
    %94 = vmatpush.msra.mxu0 %v81
    %95 = vmatpush.msra.mxu0 %v80
    %96 = vmatpush.msra.mxu0 %v79
    %97 = vmatpush.msra.mxu0 %v78
    %98 = vmatpush.msra.mxu0 %v77
    %99 = vmatpush.msra.mxu0 %v76
    %100 = vmatpush.msra.mxu0 %v75
    %101 = vmatpush.msra.mxu0 %v74
    %102 = vmatpush.msra.mxu0 %v73
    %103 = vmatpush.msra.mxu0 %v72
    %104 = vmatpush.msra.mxu0 %v71
    %105 = vmatpush.msra.mxu0 %v70
    %106 = vmatmul.f32.gmra.mxu0 %v68
    %v107 = vpop.f32.mrf.mxu0
    %v108 = vadd.f32 %v88, %v107
    %109 = vmatmul.f32.gmra.mxu0 %v69
    %v110 = vpop.f32.mrf.mxu0
    %v111 = vadd.f32 %v88, %v110
    %112 = vdwg.mxu0
    %v113 = vmul.f32 %v108, 0.5
    %v114 = vmul.f32 %v111, 0.5
    %v115 = vmul.f32 %v108, 0.70710677
    %v116 = vmul.f32 %v111, 0.70710677
    %v117 = vmul.f32 %v115, %v115
    %v118 = vmin.f32 16.0, %v117
    %v119 = vmul.f32 %v118, 2.1237322e-06
    %v120 = vadd.f32 %v119, 0.00028619796
    %v121 = vmul.f32 %v118, %v120
    %v122 = vadd.f32 %v121, 0.0036580483
    %v123 = vmul.f32 %v118, %v122
    %v124 = vadd.f32 %v123, 0.05243302
    %v125 = vmul.f32 %v118, %v124
    %v126 = vadd.f32 %v125, 0.18741608
    %v127 = vmul.f32 %v118, %v126
    %v128 = vadd.f32 %v127, 1.1283791
    %v129 = vmul.f32 %v115, %v128
    %v130 = vmul.f32 %v118, 3.8918573e-05
    %v131 = vadd.f32 %v130, 0.001143296
    %v132 = vmul.f32 %v118, %v131
    %v133 = vadd.f32 %v132, 0.014752088
    %v134 = vmul.f32 %v118, %v133
    %v135 = vadd.f32 %v134, 0.112945676
    %v136 = vmul.f32 %v118, %v135
    %v137 = vadd.f32 %v136, 0.4994258
    %v138 = vmul.f32 %v118, %v137
    %v139 = vadd.f32 %v138, 1.0
    %v140 = vrcp.pop %v139
    %v141 = vmul.f32 %v139, %v140
    %v142 = vsub.f32 1.0, %v141
    %v143 = vmul.f32 %v140, %v142
    %v144 = vadd.f32 %v140, %v143
    %vm145 = vweird.f32 %v139
    %vm146 = vweird.f32 %v140
    %vm147 = vmor %vm145, %vm146
    %v148 = vsel %vm147, %v140, %v144
    %v149 = vand.u32 2147483647, %v139
    %vm150 = vcmp.eq.f32.partialorder %v149, 8.507059e+37
    %v151 = vand.u32 %v139, 2147483648
    %v152 = vor.u32 1.1754944e-38, %v151
    %v153 = vsel %vm150, %v152, %v148
    %v154 = vmul.f32 %v129, %v153
    %v155 = vmin.f32 %v154, 1.0
    %v156 = vmax.f32 %v155, -1.0
    %v157 = vmul.f32 %v116, %v116
    %v158 = vmin.f32 16.0, %v157
    %v159 = vmul.f32 %v158, 2.1237322e-06
    %v160 = vadd.f32 %v159, 0.00028619796
    %v161 = vmul.f32 %v158, %v160
    %v162 = vadd.f32 %v161, 0.0036580483
    %v163 = vmul.f32 %v158, %v162
    %v164 = vadd.f32 %v163, 0.05243302
    %v165 = vmul.f32 %v158, %v164
    %v166 = vadd.f32 %v165, 0.18741608
    %v167 = vmul.f32 %v158, %v166
    %v168 = vadd.f32 %v167, 1.1283791
    %v169 = vmul.f32 %v116, %v168
    %v170 = vmul.f32 %v158, 3.8918573e-05
    %v171 = vadd.f32 %v170, 0.001143296
    %v172 = vmul.f32 %v158, %v171
    %v173 = vadd.f32 %v172, 0.014752088
    %v174 = vmul.f32 %v158, %v173
    %v175 = vadd.f32 %v174, 0.112945676
    %v176 = vmul.f32 %v158, %v175
    %v177 = vadd.f32 %v176, 0.4994258
    %v178 = vmul.f32 %v158, %v177
    %v179 = vadd.f32 %v178, 1.0
    %v180 = vrcp.pop %v179
    %v181 = vmul.f32 %v179, %v180
    %v182 = vsub.f32 1.0, %v181
    %v183 = vmul.f32 %v180, %v182
    %v184 = vadd.f32 %v180, %v183
    %vm185 = vweird.f32 %v179
    %vm186 = vweird.f32 %v180
    %vm187 = vmor %vm185, %vm186
    %v188 = vsel %vm187, %v180, %v184
    %v189 = vand.u32 2147483647, %v179
    %vm190 = vcmp.eq.f32.partialorder %v189, 8.507059e+37
    %v191 = vand.u32 %v179, 2147483648
    %v192 = vor.u32 1.1754944e-38, %v191
    %v193 = vsel %vm190, %v192, %v188
    %v194 = vmul.f32 %v169, %v193
    %v195 = vmin.f32 %v194, 1.0
    %v196 = vmax.f32 %v195, -1.0
    %v197 = vadd.f32 %v156, 1.0
    %v198 = vadd.f32 %v196, 1.0
    %v199 = vmul.f32 %v113, %v197
    %v200 = vmul.f32 %v114, %v198
    %v201 = vld [vmem:[#allocation7] sm:$0xff]
    %v202 = vld [vmem:[#allocation7 + $0x8] sm:$0xff]
    %v203 = vld [vmem:[#allocation7 + $0x10] sm:$0xff]
    %v204 = vld [vmem:[#allocation7 + $0x18] sm:$0xff]
    %v205 = vld [vmem:[#allocation7 + $0x20] sm:$0xff]
    %v206 = vld [vmem:[#allocation7 + $0x28] sm:$0xff]
    %v207 = vld [vmem:[#allocation7 + $0x30] sm:$0xff]
    %v208 = vld [vmem:[#allocation7 + $0x38] sm:$0xff]
    %v209 = vld [vmem:[#allocation7 + $0x40] sm:$0xff]
    %v210 = vld [vmem:[#allocation7 + $0x48] sm:$0xff]
    %v211 = vld [vmem:[#allocation7 + $0x50] sm:$0xff]
    %v212 = vld [vmem:[#allocation7 + $0x58] sm:$0xff]
    %v213 = vld [vmem:[#allocation7 + $0x60] sm:$0xff]
    %v214 = vld [vmem:[#allocation7 + $0x68] sm:$0xff]
    %v215 = vld [vmem:[#allocation7 + $0x70] sm:$0xff]
    %v216 = vld [vmem:[#allocation7 + $0x78] sm:$0xff]
    %217 = vmatpush.msra.mxu0 %v216
    %218 = vmatpush.msra.mxu0 %v215
    %219 = vmatpush.msra.mxu0 %v214
    %220 = vmatpush.msra.mxu0 %v213
    %221 = vmatpush.msra.mxu0 %v212
    %222 = vmatpush.msra.mxu0 %v211
    %223 = vmatpush.msra.mxu0 %v210
    %224 = vmatpush.msra.mxu0 %v209
    %225 = vmatpush.msra.mxu0 %v208
    %226 = vmatpush.msra.mxu0 %v207
    %227 = vmatpush.msra.mxu0 %v206
    %228 = vmatpush.msra.mxu0 %v205
    %229 = vmatpush.msra.mxu0 %v204
    %230 = vmatpush.msra.mxu0 %v203
    %231 = vmatpush.msra.mxu0 %v202
    %232 = vmatpush.msra.mxu0 %v201
    %233 = vmatmul.f32.gmra.mxu0 %v199
    %v234 = vpop.f32.mrf.mxu0
    %v235 = vadd.f32 0.0, %v234
    %236 = vmatmul.f32.gmra.mxu0 %v200
    %v237 = vpop.f32.mrf.mxu0
    %v238 = vadd.f32 0.0, %v237
    %239 = vdwg.mxu0
    %p240 = scmp.eq.s32.totalorder 0, 0
    // Predicated region
    $region34: #{tpu_custom_call.1} parent=1 // pred_check
      %p241 = pneg %p240
    $region35: #{tpu_custom_call.1} parent=1 // pred_check_branch
      %243 = sbr.rel (%p241) target = $region37
    $region36: #{tpu_custom_call.1} parent=1 // pred_region
      %244 = vst [vmem:[#allocation8] sm:$0xff] %v235
      %245 = vst [vmem:[#allocation8 + $0x8] sm:$0xff] %v238
    $region37: #{tpu_custom_call.1} parent=1 // pred_fallthru
      _
    %p246 = scmp.ne.s32.totalorder 0, 0
    // Predicated region
    $region38: #{tpu_custom_call.1} parent=1 // pred_check
      %p247 = pneg %p246
    $region39: #{tpu_custom_call.1} parent=1 // pred_check_branch
      %249 = sbr.rel (%p247) target = $region41
    $region40: #{tpu_custom_call.1} parent=1 // pred_region
      %v250 = vld [vmem:[#allocation8] sm:$0xff]
      %v251 = vld [vmem:[#allocation8 + $0x8] sm:$0xff]
      %v252 = vadd.f32 %v250, %v235
      %v253 = vadd.f32 %v251, %v238
      %254 = vst [vmem:[#allocation8] sm:$0xff] %v252
      %255 = vst [vmem:[#allocation8 + $0x8] sm:$0xff] %v253
    $region41: #{tpu_custom_call.1} parent=1 // pred_fallthru
      _
    // Predicated region
    $region42: #{tpu_custom_call.1} parent=1 // pred_check
      %p256 = pneg %p240
    $region43: #{tpu_custom_call.1} parent=1 // pred_check_branch
      %258 = sbr.rel (%p256) target = $region45
    $region44: #{tpu_custom_call.1} parent=1 // pred_region
      %v259 = vld [vmem:[#allocation8] sm:$0xff]
      %v260 = vld [vmem:[#allocation8 + $0x8] sm:$0xff]
      %v261 = vld [vmem:[%s4] sm:$0x1]
      %v263 = vperm.slane %v261, 0
      %v265 = vadd.f32 %v259, %v263
      %v266 = vadd.f32 %v260, %v263
      %267 = vst [vmem:[#allocation8] sm:$0xff] %v265
      %268 = vst [vmem:[#allocation8 + $0x8] sm:$0xff] %v266
    $region45: #{tpu_custom_call.1} parent=1 // pred_fallthru
      _
    // Predicated region
    $region46: #{tpu_custom_call.1} parent=1 // pred_check
      _
    $region47: #{tpu_custom_call.1} parent=1 // pred_check_branch
      %270 = sbr.rel (0) target = $region49
    $region48: #{tpu_custom_call.1} parent=1 // pred_region
      %272 = vsyncadd [#allocation4], 0
      %s273 = sshll.u32 [#allocation8], 4
      %s274 = int_to_ptr.vmem [resolvable:$true] %s273
      %s275 = sshll.u32 %s5, 4
      %s276 = int_to_ptr.hbm [resolvable:$true] %s275
      %281 = dma.vmem_to_hbm [thread:$0]  %s274, 256, %s276, [#allocation4], 128, 128, 8
    $region49: #{tpu_custom_call.1} parent=1 // pred_fallthru
      _
    // Predicated region
    $region50: #{tpu_custom_call.1} parent=1 // pred_check
      _
    $region51: #{tpu_custom_call.1} parent=1 // pred_check_branch
      %283 = sbr.rel (0) target = $region53
    $region52: #{tpu_custom_call.1} parent=1 // pred_region
      %285 = dma.done [#allocation4], 256
    $region53: #{tpu_custom_call.1} parent=1 // pred_fallthru
      _
    %286 = vsyncpa [#allocation3], 1
    %287 = vsyncpa [#allocation6], 1
    %288 = vsyncpa [#allocation4], 1

</llo_original>
